<compile_context>
chip_gen: v6e
topology: v6e:2x2x1
jax: 0.10.0
libtpu: 0.0.40
codegen_flags: <defaults>
</compile_context>

<pallas_src>
import functools

import jax
import jax.numpy as jnp
from jax.experimental import pallas as pl
from jax.experimental.pallas import tpu as pltpu


# ----------------------------- helpers -----------------------------

def _round_up(x, m):
    return ((x + m - 1) // m) * m


def _pick_tile(dim, unit, max_t):
    """Pad `dim` to a multiple of `unit`; return (largest tile <= max_t dividing it, padded dim)."""
    dp = _round_up(max(int(dim), 1), unit)
    best = unit
    for t in range(unit, max_t + 1, unit):
        if dp % t == 0:
            best = t
    return best, dp


# ----------------------------- fused tiled GEMM (the hot path) -----------------------------
# O = [ act( (A @ B) * in_scale + bias ) + residual ] * out_scale
# A,B are bf16; accumulation is f32 in a VMEM scratch across the K grid axis.

def _make_gemm_kernel(act, alpha, has_in_scale, has_out_scale, has_residual):
    def kernel(*refs):
        a_ref, b_ref, bias_ref = refs[0], refs[1], refs[2]
        idx = 3
        in_s_ref = out_s_ref = res_ref = None
        if has_in_scale:
            in_s_ref = refs[idx]; idx += 1
        if has_out_scale:
            out_s_ref = refs[idx]; idx += 1
        if has_residual:
            res_ref = refs[idx]; idx += 1
        o_ref = refs[idx]
        acc_ref = refs[idx + 1]

        @pl.when(pl.program_id(2) == 0)
        def _():
            acc_ref[...] = jnp.zeros_like(acc_ref)

        acc_ref[...] += jnp.dot(a_ref[...], b_ref[...],
                                preferred_element_type=jnp.float32)

        @pl.when(pl.program_id(2) == pl.num_programs(2) - 1)
        def _():
            y = acc_ref[...]
            if has_in_scale:                      # folded k-space normalisation (linear pre-bias)
                y = y * in_s_ref[0, 0]
            y = y + bias_ref[...]
            if act == "prelu":                    # PReLU with deterministic init value 0.25
                y = jnp.where(y >= 0.0, y, alpha * y)
            elif act == "relu":
                y = jnp.maximum(y, 0.0)
            elif act == "sigmoid":
                y = jax.nn.sigmoid(y)
            elif act == "tanh":
                y = jnp.tanh(y)
            if has_residual:                      # fused ResNet skip connection
                y = y + res_ref[...]
            if has_out_scale:                     # folded k-space denormalisation (post-activation)
                y = y * out_s_ref[0, 0]
            o_ref[...] = y.astype(o_ref.dtype)

    return kernel


def fused_gemm(a, b, bias, *, act="none", alpha=0.25,
               residual=None, in_scale=None, out_scale=None):
    M, K = a.shape
    K2, N = b.shape
    assert K == K2
    tm, Mp = _pick_tile(M, 8, 512)
    tk, Kp = _pick_tile(K, 128, 512)
    tn, Np = _pick_tile(N, 128, 512)    # lane-dense output tiles (Cout=1 conv padded to 128)

    a_p = jnp.pad(a.astype(jnp.bfloat16), ((0, Mp - M), (0, Kp - K)))
    b_p = jnp.pad(b.astype(jnp.bfloat16), ((0, Kp - K), (0, Np - N)))
    bias_p = jnp.pad(bias.reshape(1, N).astype(jnp.float32), ((0, 0), (0, Np - N)))

    inputs = [a_p, b_p, bias_p]
    in_specs = [pl.BlockSpec((tm, tk), lambda i, j, k: (i, k)),
                pl.BlockSpec((tk, tn), lambda i, j, k: (k, j)),
                pl.BlockSpec((1, tn), lambda i, j, k: (0, j))]

    if in_scale is not None:
        inputs.append(in_scale.reshape(1, 1).astype(jnp.float32))
        in_specs.append(pl.BlockSpec(memory_space=pltpu.MemorySpace.SMEM))
    if out_scale is not None:
        inputs.append(out_scale.reshape(1, 1).astype(jnp.float32))
        in_specs.append(pl.BlockSpec(memory_space=pltpu.MemorySpace.SMEM))
    res_bytes = 0
    if residual is not None:
        res_p = jnp.pad(residual.astype(jnp.float32), ((0, Mp - M), (0, Np - N)))
        inputs.append(res_p)
        in_specs.append(pl.BlockSpec((tm, tn), lambda i, j, k: (i, j)))
        res_bytes = Mp * Np * 4

    kernel = _make_gemm_kernel(act, float(alpha),
                               in_scale is not None, out_scale is not None,
                               residual is not None)
    cost = pl.CostEstimate(
        flops=2 * Mp * Kp * Np,
        transcendentals=(Mp * Np if act in ("sigmoid", "tanh") else 0),
        bytes_accessed=Mp * Kp * 2 + Kp * Np * 2 + Mp * Np * 4 + res_bytes,
    )
    out = pl.pallas_call(
        kernel,
        out_shape=jax.ShapeDtypeStruct((Mp, Np), jnp.float32),
        grid=(Mp // tm, Np // tn, Kp // tk),
        in_specs=in_specs,
        out_specs=pl.BlockSpec((tm, tn), lambda i, j, k: (i, j)),
        scratch_shapes=[pltpu.VMEM((tm, tn), jnp.float32)],
        compiler_params=pltpu.CompilerParams(
            dimension_semantics=("parallel", "parallel", "arbitrary")),
        cost_estimate=cost,
    )(*inputs)
    return out[:M, :N]


# ----------------------------- tiled k-space max-|.| reduction -----------------------------

def _max_sq_kernel(re_ref, im_ref, o_ref, acc_ref):
    @pl.when(pl.program_id(0) == 0)
    def _():
        acc_ref[...] = jnp.zeros_like(acc_ref)

    r = re_ref[...]
    i = im_ref[...]
    acc_ref[...] = jnp.maximum(acc_ref[...], jnp.max(r * r + i * i))

    @pl.when(pl.program_id(0) == pl.num_programs(0) - 1)
    def _():
        o_ref[...] = acc_ref[...]


@jax.jit
def kspace_max_sq(re, im):
    """max(re^2 + im^2) over all elements; (1,1) f32.  sqrt is done on the scalar outside."""
    t = re.size
    lanes = 512
    rows = _round_up(max(-(-t // lanes), 1), 8)
    tr = min(256, rows)
    rows = _round_up(rows, tr)
    total = rows * lanes
    r2 = jnp.pad(re.reshape(-1), (0, total - t)).reshape(rows, lanes)
    i2 = jnp.pad(im.reshape(-1), (0, total - t)).reshape(rows, lanes)
    return pl.pallas_call(
        _max_sq_kernel,
        out_shape=jax.ShapeDtypeStruct((1, 1), jnp.float32),
        grid=(rows // tr,),
        in_specs=[pl.BlockSpec((tr, lanes), lambda i: (i, 0)),
                  pl.BlockSpec((tr, lanes), lambda i: (i, 0))],
        out_specs=pl.BlockSpec((1, 1), lambda i: (0, 0)),
        scratch_shapes=[pltpu.VMEM((1, 1), jnp.float32)],
        compiler_params=pltpu.CompilerParams(dimension_semantics=("arbitrary",)),
    )(r2, i2)


# ----------------------------- conv wrappers (im2col glue + fused Pallas GEMM) -----------------------------

@functools.partial(jax.jit,
                   static_argnames=("stride", "pad", "pad_mode", "act", "alpha"))
def conv2d_nhwc(x, w_oihw, b, *, stride=1, pad=0, pad_mode="zeros",
                act="none", alpha=0.25,
                residual=None, in_scale=None, out_scale=None):
    # x: (N, H, W, Cin); w_oihw: PyTorch Conv2d weight layout (Cout, Cin, KH, KW)
    n, h, wd, cin = x.shape
    cout, cin_w, kh, kw = w_oihw.shape
    assert cin_w == cin
    if pad > 0:
        mode = {"zeros": "constant", "reflect": "reflect", "replicate": "edge"}[pad_mode]
        x = jnp.pad(x, ((0, 0), (pad, pad), (pad, pad), (0, 0)), mode=mode)
    hp, wp = x.shape[1], x.shape[2]
    ho = (hp - kh) // stride + 1
    wo = (wp - kw) // stride + 1
    # TODO(synk): im2col patches are still materialised (bf16, so half the v1 bytes) in HBM before
    # the GEMM; moving the shifted-window reads into the kernel (K-grid over the KHxKW taps)
    # would remove the remaining KH*KW x HBM inflation.
    cols = []
    for dy in range(kh):
        for dx in range(kw):
            cols.append(x[:, dy:dy + stride * ho:stride, dx:dx + stride * wo:stride, :])
    patches = jnp.concatenate(cols, axis=-1).reshape(n * ho * wo, kh * kw * cin)
    w2 = jnp.transpose(w_oihw, (2, 3, 1, 0)).reshape(kh * kw * cin, cout)
    res2 = None if residual is None else residual.reshape(n * ho * wo, cout)
    y = fused_gemm(patches, w2, b, act=act, alpha=alpha,
                   residual=res2, in_scale=in_scale, out_scale=out_scale)
    return y.reshape(n, ho, wo, cout)


@functools.partial(jax.jit, static_argnames=("act", "alpha"))
def conv_transpose2d_subpixel(x, w_iohw, b, *, act="none", alpha=0.25):
    # PyTorch ConvTranspose2d(stride=2, kernel=3, padding=1, output_padding=1) as a 4-phase
    # subpixel decomposition: out[2u+py, 2v+px] = phase_{py,px}(x)[u, v].
    # TODO(synk): hard-coded to the 3x3/stride-2/pad-1/outpad-1 case used by this model.
    n, h, w_, cin = x.shape
    cin_w, cout, kh, kw = w_iohw.shape
    assert kh == 3 and kw == 3 and cin_w == cin
    # "flipped" kernel in (Cout, Cin, 3, 3) layout, as seen by the equivalent forward conv.
    wf = jnp.transpose(w_iohw[:, :, ::-1, ::-1], (1, 0, 2, 3))
    xpw = jnp.pad(x, ((0, 0), (0, 0), (0, 1), (0, 0)))    # right-pad W by 1
    xph = jnp.pad(x, ((0, 0), (0, 1), (0, 0), (0, 0)))    # bottom-pad H by 1
    xphw = jnp.pad(x, ((0, 0), (0, 1), (0, 1), (0, 0)))
    p00 = conv2d_nhwc(x,    wf[:, :, 1:2, 1:2],   b, stride=1, pad=0, act=act, alpha=alpha)
    p01 = conv2d_nhwc(xpw,  wf[:, :, 1:2, 0::2],  b, stride=1, pad=0, act=act, alpha=alpha)
    p10 = conv2d_nhwc(xph,  wf[:, :, 0::2, 1:2],  b, stride=1, pad=0, act=act, alpha=alpha)
    p11 = conv2d_nhwc(xphw, wf[:, :, 0::2, 0::2], b, stride=1, pad=0, act=act, alpha=alpha)
    top = jnp.stack([p00, p01], axis=3)                   # (N,H,W,2,C)
    bot = jnp.stack([p10, p11], axis=3)
    y = jnp.stack([top, bot], axis=2)                     # (N,H,2,W,2,C)
    return y.reshape(n, 2 * h, 2 * w_, cout)


# ----------------------------- parameter construction (deterministic) -----------------------------

def _init_conv(key, cout, cin, kh, kw):
    # CustomInitialiseWeights ~ N(0, 0.02) on conv weights, zero bias
    w = 0.02 * jax.random.normal(key, (cout, cin, kh, kw), jnp.float32)
    b = jnp.zeros((cout,), jnp.float32)
    return {"w": w, "b": b}


def init_resnet(key, in_ch, out_ch, res_blocks, nf, updown_blocks):
    cnt = [0]

    def nk():
        k = jax.random.fold_in(key, cnt[0])
        cnt[0] += 1
        return k

    params = {"init": _init_conv(nk(), nf, in_ch, 7, 7)}
    feat = nf
    downs = []
    for _ in range(updown_blocks):
        downs.append(_init_conv(nk(), feat * 2, feat, 3, 3))
        feat *= 2
    params["down"] = downs
    params["res"] = [{"c1": _init_conv(nk(), feat, feat, 3, 3),
                      "c2": _init_conv(nk(), feat, feat, 3, 3)} for _ in range(res_blocks)]
    ups = []
    for _ in range(updown_blocks):
        # ConvTranspose2d weight shape (Cin, Cout, 3, 3)
        ups.append({"w": 0.02 * jax.random.normal(nk(), (feat, feat // 2, 3, 3), jnp.float32),
                    "b": jnp.zeros((feat // 2,), jnp.float32)})
        feat //= 2
    params["up"] = ups
    params["final"] = _init_conv(nk(), out_ch, feat, 7, 7)
    return params


def resnet_forward(params, x_nhwc, out_act, alpha=0.25, in_scale=None, out_scale=None):
    # initial: ReflectionPad(3) + Conv7 + PReLU  (optional folded k-space normalisation)
    x = conv2d_nhwc(x_nhwc, params["init"]["w"], params["init"]["b"],
                    stride=1, pad=3, pad_mode="reflect", act="prelu", alpha=alpha,
                    in_scale=in_scale)
    # downsampling: Conv3 stride2 pad1 + PReLU
    for d in params["down"]:
        x = conv2d_nhwc(x, d["w"], d["b"], stride=2, pad=1, pad_mode="zeros",
                        act="prelu", alpha=alpha)
    # residual blocks (eval-mode dropout = identity; do_batchnorm=False => no norm);
    # the skip-add is fused into conv2's GEMM epilogue.
    for blk in params["res"]:
        y = conv2d_nhwc(x, blk["c1"]["w"], blk["c1"]["b"], stride=1, pad=1,
                        pad_mode="reflect", act="prelu", alpha=alpha)
        x = conv2d_nhwc(y, blk["c2"]["w"], blk["c2"]["b"], stride=1, pad=1,
                        pad_mode="reflect", act="none", residual=x)
    # upsampling: ConvTranspose3 stride2 pad1 outpad1 + PReLU (subpixel phases)
    for u in params["up"]:
        x = conv_transpose2d_subpixel(x, u["w"], u["b"], act="prelu", alpha=alpha)
    # final: ReflectionPad(3) + Conv7 + out activation (optional folded k-space denorm)
    x = conv2d_nhwc(x, params["final"]["w"], params["final"]["b"],
                    stride=1, pad=3, pad_mode="reflect", act=out_act,
                    out_scale=out_scale)
    return x


# ----------------------------- MoCoReCoNet -----------------------------

class MoCoReCoNetPallas:
    def __init__(self, key, in_channels=1, out_channels=1, res_blocks=14,
                 starting_nfeatures=64, updown_blocks=2, inner_norm_ksp=True):
        kr, km = jax.random.split(key)
        self.in_channels = in_channels
        self.inner_norm_ksp = inner_norm_ksp
        # reconet = ImResNet(res_blocks=res_blocks, out_act='sigmoid')
        self.reco_params = init_resnet(kr, in_channels, out_channels, res_blocks,
                                       starting_nfeatures, updown_blocks)
        # moconet = CentreKSPMoCoNet(res_blocks=56, out_act='tanh'); complex_moconet=False =>
        # real/imag carried as 2*channels through the k-space ResNet.
        # TODO(synk): exact centre-k-space crop logic of CentreKSPMoCoNet unavailable; full k-space used.
        self.moco_params = init_resnet(km, 2 * in_channels, 2 * out_channels, 56,
                                       starting_nfeatures, updown_blocks)

    def _moconet(self, x_nchw):
        axes = (-2, -1)
        c = self.in_channels
        # TODO(synk): FFT/IFFT have no Pallas primitive; kept in jnp.fft (glue).
        ksp = jnp.fft.fftshift(jnp.fft.fft2(jnp.fft.ifftshift(x_nchw, axes=axes), axes=axes), axes=axes)
        re = jnp.real(ksp).astype(jnp.float32)
        im = jnp.imag(ksp).astype(jnp.float32)
        in_scale = out_scale = None
        if self.inner_norm_ksp:
            # TODO(synk): global (batch-wide) normalisation, as in v1; per-sample variant unknown.
            scale = jnp.maximum(jnp.sqrt(kspace_max_sq(re, im)), 1e-12)   # (1,1)
            in_scale = 1.0 / scale          # folded into the first conv's epilogue
            out_scale = scale               # folded into the last conv's epilogue (after tanh)
        xk = jnp.concatenate([re, im], axis=1)                    # (N, 2C, H, W)
        xk = jnp.transpose(xk, (0, 2, 3, 1))                      # NHWC for the kernels
        yk = resnet_forward(self.moco_params, xk, out_act="tanh",
                            in_scale=in_scale, out_scale=out_scale)
        yk = jnp.transpose(yk, (0, 3, 1, 2))                      # back to NCHW
        yre, yim = yk[:, :c], yk[:, c:]
        ksp_out = yre + 1j * yim
        img = jnp.fft.fftshift(jnp.fft.ifft2(jnp.fft.ifftshift(ksp_out, axes=axes), axes=axes), axes=axes)
        return jnp.abs(img).astype(jnp.float32)

    def __call__(self, inp_nchw, gt=None, loss_func=None):
        mocoim_out = self._moconet(inp_nchw)                      # NCHW
        x = jnp.transpose(mocoim_out, (0, 2, 3, 1))               # NHWC
        recoim_out = resnet_forward(self.reco_params, x, out_act="sigmoid")
        recoim_out = jnp.transpose(recoim_out, (0, 3, 1, 2))      # NCHW
        if gt is None or loss_func is None:
            return recoim_out
        # (loss path would mirror the PyTorch module; not exercised here)
        return recoim_out


if __name__ == "__main__":
    key = jax.random.PRNGKey(0)
    pkey, xkey = jax.random.split(key)
    # SMALL demo config: batch=2, 1 channel, 16x16 spatial, reduced feature width for speed.
    model = MoCoReCoNetPallas(pkey, in_channels=1, out_channels=1,
                              res_blocks=4, starting_nfeatures=16, updown_blocks=2)
    x = jax.random.uniform(xkey, (2, 1, 16, 16), dtype=jnp.float32)
    out = model(x)
    out = jax.block_until_ready(out)
    assert out.shape == (2, 1, 16, 16)
    assert bool(jnp.all(jnp.isfinite(out)))
    print("KERNEL_OK")
</pallas_src>

<mosaic_0001>
module attributes {stable_mosaic.version = 11 : i64} {
  func.func @_max_sq_kernel(%arg0: i32, %arg1: memref<8x512xf32, #tpu.memory_space<vmem>>, %arg2: memref<8x512xf32, #tpu.memory_space<vmem>>, %arg3: memref<1x1xf32, #tpu.memory_space<vmem>>, %arg4: memref<1x1xf32, #tpu.memory_space<vmem>>) attributes {dimension_semantics = [#tpu.dimension_semantics<arbitrary>], iteration_bounds = array<i64: 1>, scalar_prefetch = 0 : i64, scratch_operands = 1 : i64, tpu.core_type = #tpu.core_type<tc>, window_params = [{transform_indices = @transform_0, window_bounds = array<i64: 8, 512>}, {transform_indices = @transform_1, window_bounds = array<i64: 8, 512>}, {pipeline_mode = #tpu.pipeline_mode<synchronous>, transform_indices = @transform_2, window_bounds = array<i64: 1, 1>}]} {
    %c0_i32 = arith.constant 0 : i32
    %0 = arith.cmpi eq, %arg0, %c0_i32 : i32
    %1 = arith.extui %0 : i1 to i32
    %c0_i32_0 = arith.constant 0 : i32
    %2 = arith.cmpi ne, %1, %c0_i32_0 : i32
    scf.if %2 {
      %cst_10 = arith.constant 0.000000e+00 : f32
      %19 = vector.broadcast %cst_10 : f32 to vector<1x1xf32>
      %c0_11 = arith.constant 0 : index
      %c0_12 = arith.constant 0 : index
      %20 = vector.load %arg4[%c0_11, %c0_12] : memref<1x1xf32, #tpu.memory_space<vmem>>, vector<1x1xf32>
      tpu.vector_store %arg4[%c0_11, %c0_12], %19 {strides = array<i32>} : memref<1x1xf32, #tpu.memory_space<vmem>>, vector<1x1xf32>,
    } else {
    }
    %c0 = arith.constant 0 : index
    %c0_1 = arith.constant 0 : index
    %3 = vector.load %arg1[%c0, %c0_1] : memref<8x512xf32, #tpu.memory_space<vmem>>, vector<8x512xf32>
    %c0_2 = arith.constant 0 : index
    %c0_3 = arith.constant 0 : index
    %4 = vector.load %arg2[%c0_2, %c0_3] : memref<8x512xf32, #tpu.memory_space<vmem>>, vector<8x512xf32>
    %c0_4 = arith.constant 0 : index
    %c0_5 = arith.constant 0 : index
    %5 = vector.load %arg4[%c0_4, %c0_5] : memref<1x1xf32, #tpu.memory_space<vmem>>, vector<1x1xf32>
    %6 = arith.mulf %3, %3 : vector<8x512xf32>
    %7 = arith.mulf %4, %4 : vector<8x512xf32>
    %8 = arith.addf %6, %7 : vector<8x512xf32>
    %9 = vector.shape_cast %8 : vector<8x512xf32> to vector<1x8x512xf32>
    %cst = arith.constant dense<0xFF800000> : vector<1xf32>
    %10 = vector.multi_reduction <maximumf>, %9, %cst [1, 2] : vector<1x8x512xf32> to vector<1xf32>
    %11 = vector.shape_cast %10 : vector<1xf32> to vector<1x1x1xf32>
    %12 = vector.extract %11[0, 0, 0] : f32 from vector<1x1x1xf32>
    %13 = vector.broadcast %12 : f32 to vector<1x1xf32>
    %14 = arith.maximumf %5, %13 : vector<1x1xf32>
    %c0_6 = arith.constant 0 : index
    %c0_7 = arith.constant 0 : index
    %15 = vector.load %arg4[%c0_6, %c0_7] : memref<1x1xf32, #tpu.memory_space<vmem>>, vector<1x1xf32>
    tpu.vector_store %arg4[%c0_6, %c0_7], %14 {strides = array<i32>} : memref<1x1xf32, #tpu.memory_space<vmem>>, vector<1x1xf32>,
    %c0_i32_8 = arith.constant 0 : i32
    %16 = arith.cmpi eq, %arg0, %c0_i32_8 : i32
    %17 = arith.extui %16 : i1 to i32
    %c0_i32_9 = arith.constant 0 : i32
    %18 = arith.cmpi ne, %17, %c0_i32_9 : i32
    scf.if %18 {
      %c0_10 = arith.constant 0 : index
      %c0_11 = arith.constant 0 : index
      %19 = vector.load %arg4[%c0_10, %c0_11] : memref<1x1xf32, #tpu.memory_space<vmem>>, vector<1x1xf32>
      %c0_12 = arith.constant 0 : index
      %c0_13 = arith.constant 0 : index
      %20 = vector.load %arg3[%c0_12, %c0_13] : memref<1x1xf32, #tpu.memory_space<vmem>>, vector<1x1xf32>
      tpu.vector_store %arg3[%c0_12, %c0_13], %19 {strides = array<i32>} : memref<1x1xf32, #tpu.memory_space<vmem>>, vector<1x1xf32>,
    } else {
    }
    return
  }
  func.func @transform_0(%arg0: i32) -> (i32, i32) {
    %c0_i32 = arith.constant 0 : i32
    %c0_i32_0 = arith.constant 0 : i32
    return %arg0, %c0_i32 : i32, i32
  }
  func.func @transform_1(%arg0: i32) -> (i32, i32) {
    %c0_i32 = arith.constant 0 : i32
    %c0_i32_0 = arith.constant 0 : i32
    return %arg0, %c0_i32 : i32, i32
  }
  func.func @transform_2(%arg0: i32) -> (i32, i32) {
    %c0_i32 = arith.constant 0 : i32
    %c0_i32_0 = arith.constant 0 : i32
    %c0_i32_1 = arith.constant 0 : i32
    return %c0_i32, %c0_i32_0 : i32, i32
  }
}

</mosaic_0001>

<llo_original>
// kernel: kspace_max_sq.1
$region0: #{kspace_max_sq.1}
  #allocation0 [shape = 'u32[]', space=smem, size = 0x4, offset = 0x4, fixed_abs, tag = 'smem constant byte address 0x4 - core index']
  #allocation1 [shape = 'u32[144,128]{1,0:T(1,128)}', space=vmem, size = 0x12000, scoped, tag = 'internal scratch']
  #allocation2 [shape = 'f32[1,1]{1,0:T(1,128)}', space=vmem, size = 0x200, scoped, tag = 'scratch operand']
  %s0 = inlined_call_operand.vmem [shape: f32[8,512], index: 0, kind: input, shape index: {}]
  %s1 = inlined_call_operand.vmem [shape: f32[8,512], index: 1, kind: input, shape index: {}]
  %s2 = inlined_call_operand.hbm [shape: f32[1,1], index: 2, kind: output, shape index: {}]
  %s3 = sld [smem:[#allocation0]]
  $region26: #{kspace_max_sq.1} parent=0
    _
  %s5 = ssub.s32 1, %s3
  %s6 = scalar_select 0, %s5, %s3
  $region1: #{kspace_max_sq.1} parent=0
    #allocation3 [shape = 'u8[512]{0}', space=vmem, size = 0x400, scoped, tag = 'output window, operand 0, single buffered']
    #allocation4 [shape = 's32[1]{0}', space=sflag, size = 0x4, scoped, tag = 'scoped memory for kspace_max_sq.1']
    %7 = vsyncpa [#allocation4], 0
    // Predicated region
    $region2: #{kspace_max_sq.1} parent=1 // pred_check
      _
    $region3: #{kspace_max_sq.1} parent=1 // pred_check_branch
      %9 = sbr.rel (0) target = $region5
    $region4: #{kspace_max_sq.1} parent=1 // pred_region
      _
    $region5: #{kspace_max_sq.1} parent=1 // pred_fallthru
      _
    // Predicated region
    $region6: #{kspace_max_sq.1} parent=1 // pred_check
      _
    $region7: #{kspace_max_sq.1} parent=1 // pred_check_branch
      %11 = sbr.rel (0) target = $region9
    $region8: #{kspace_max_sq.1} parent=1 // pred_region
      _
    $region9: #{kspace_max_sq.1} parent=1 // pred_fallthru
      _
    %p12 = scmp.eq.s32.totalorder 0, 0
    // Predicated region
    $region10: #{kspace_max_sq.1} parent=1 // pred_check
      %p13 = pneg %p12
    $region11: #{kspace_max_sq.1} parent=1 // pred_check_branch
      %15 = sbr.rel (%p13) target = $region13
    $region12: #{kspace_max_sq.1} parent=1 // pred_region
      %vm16 = vcmask 0
      %17 = vst.msk [vmem:[#allocation2] sm:$0x1] %vm16, 0.0
    $region13: #{kspace_max_sq.1} parent=1 // pred_fallthru
      _
    %v18 = vld [vmem:[%s0] sm:$0xff]
    %v19 = vld [vmem:[%s0 + $0x8] sm:$0xff]
    %v20 = vld [vmem:[%s0 + $0x10] sm:$0xff]
    %v21 = vld [vmem:[%s0 + $0x18] sm:$0xff]
    %v22 = vld [vmem:[%s1] sm:$0xff]
    %v23 = vld [vmem:[%s1 + $0x8] sm:$0xff]
    %v24 = vld [vmem:[%s1 + $0x10] sm:$0xff]
    %v25 = vld [vmem:[%s1 + $0x18] sm:$0xff]
    %v26 = vld [vmem:[#allocation2] sm:$0x1]
    %v27 = vmul.f32 %v18, %v18
    %v28 = vmul.f32 %v19, %v19
    %v29 = vmul.f32 %v20, %v20
    %v30 = vmul.f32 %v21, %v21
    %v31 = vmul.f32 %v22, %v22
    %v32 = vmul.f32 %v23, %v23
    %v33 = vmul.f32 %v24, %v24
    %v34 = vmul.f32 %v25, %v25
    %v35 = vadd.f32 %v27, %v31
    %v36 = vadd.f32 %v28, %v32
    %v37 = vadd.f32 %v29, %v33
    %v38 = vadd.f32 %v30, %v34
    %v39 = vmax.f32 %v35, %v36
    %v40 = vmax.f32 %v37, %v38
    %v41 = vmax.f32 %v39, %v40
    %42 = vmax.xlane.f32.xlu0 %v41
    %v43 = vpop.xlane.xlu0 %42
    %v44 = vrot.slane %v43, 4
    %v45 = vmax.f32 %v43, %v44
    %v46 = vrot.slane %v45, 2
    %v47 = vmax.f32 %v45, %v46
    %v48 = vrot.slane %v47, 1
    %v49 = vmax.f32 %v47, %v48
    %s50 = vtos %v49
    %v51 = vstv %s50
    %v52 = vmax.f32 %v26, %v51
    %vm53 = vcmask 0
    %54 = vst.msk [vmem:[#allocation2] sm:$0x1] %vm53, %v52
    // Predicated region
    $region14: #{kspace_max_sq.1} parent=1 // pred_check
      %p55 = pneg %p12
    $region15: #{kspace_max_sq.1} parent=1 // pred_check_branch
      %57 = sbr.rel (%p55) target = $region17
    $region16: #{kspace_max_sq.1} parent=1 // pred_region
      %v58 = vld [vmem:[#allocation2] sm:$0x1]
      %59 = vst.msk [vmem:[#allocation3] sm:$0x1] %vm53, %v58
    $region17: #{kspace_max_sq.1} parent=1 // pred_fallthru
      _
    // Predicated region
    $region18: #{kspace_max_sq.1} parent=1 // pred_check
      _
    $region19: #{kspace_max_sq.1} parent=1 // pred_check_branch
      %61 = sbr.rel (0) target = $region21
    $region20: #{kspace_max_sq.1} parent=1 // pred_region
      %s63 = ssub.s32 16, 16
      %64 = vsyncadd [#allocation4], %s63
      %s66 = sshll.u32 [#allocation3], 4
      %s67 = int_to_ptr.vmem [resolvable:$true] %s66
      %69 = dma.vmem_to_hbm [thread:$0]  %s67, 16, %s2, [#allocation4]
    $region21: #{kspace_max_sq.1} parent=1 // pred_fallthru
      _
    // Predicated region
    $region22: #{kspace_max_sq.1} parent=1 // pred_check
      _
    $region23: #{kspace_max_sq.1} parent=1 // pred_check_branch
      %71 = sbr.rel (0) target = $region25
    $region24: #{kspace_max_sq.1} parent=1 // pred_region
      %72 = dma.done [#allocation4], 16
    $region25: #{kspace_max_sq.1} parent=1 // pred_fallthru
      _
    %73 = vsyncpa [#allocation4], 1

</llo_original>
